<compile_context>
chip_gen: v6e
topology: v6e:2x2x1
jax: 0.10.0
libtpu: 0.0.40
codegen_flags: <defaults>
</compile_context>

<pallas_src>
import functools
import numpy as np

import jax
import jax.numpy as jnp
from jax.experimental import pallas as pl
from jax.experimental.pallas import tpu as pltpu


def _cdiv(a, b):
    return -(-a // b)


def _round_up(a, b):
    return _cdiv(a, b) * b


def _focal_loss_kernel(x_ref, t_ref, o_ref, *, alpha, gamma, eps,
                       full_rows, rem_cols, needs_mask):
    # x_ref: (BR, BC) float logits, t_ref: (BR, BC) float targets.
    x = x_ref[...].astype(jnp.float32)
    t = t_ref[...].astype(jnp.float32)
    br, bc = x.shape

    # One transcendental exp per element; reuse it for BCE and the sigmoid.
    e = jnp.exp(-jnp.abs(x))
    bce = jnp.maximum(x, 0.0) - x * t + jnp.log1p(e)          # stable BCE-with-logits
    pt = jnp.where(x >= 0.0, 1.0, e) / (1.0 + e)              # stable sigmoid
    pt = jnp.clip(pt, eps, 1.0 - eps)

    one_m_pt = 1.0 - pt
    if gamma == 2:                                            # default: plain multiplies
        pos_pow = one_m_pt * one_m_pt
        neg_pow = pt * pt
    else:
        pos_pow = jnp.power(one_m_pt, gamma)
        neg_pow = jnp.power(pt, gamma)

    # Exact two-term blend (preserves soft-target semantics of the module).
    focal_w = alpha * pos_pow * t + (1.0 - alpha) * neg_pow * (1.0 - t)
    contrib = focal_w * bce

    if not needs_mask:
        # Lane-dense partial sum for this grid step: (1, BC).
        o_ref[0] = jnp.sum(contrib, axis=0, keepdims=True)
    else:
        # All invalid elements (partial last row-block and/or padded last row)
        # live in the LAST grid step only -> gate the mask there; every other
        # step writes an unmasked row-sum (no per-block iota/compare VALU cost).
        j = pl.program_id(0)
        is_last = j == pl.num_programs(0) - 1

        @pl.when(jnp.logical_not(is_last))
        def _():
            o_ref[0] = jnp.sum(contrib, axis=0, keepdims=True)

        @pl.when(is_last)
        def _():
            # Per-row / per-col compares (no flat linear index -> no i32 overflow).
            row = jax.lax.broadcasted_iota(jnp.int32, (br, bc), 0) + j * br
            if rem_cols == 0:
                valid = row < full_rows
            else:
                col = jax.lax.broadcasted_iota(jnp.int32, (br, bc), 1)
                valid = (row < full_rows) | ((row == full_rows) & (col < rem_cols))
            o_ref[0] = jnp.sum(jnp.where(valid, contrib, 0.0), axis=0, keepdims=True)


def _vmem_capacity_bytes():
    # Generation-aware tiling: v5e/v6e have 128 MiB VMEM per core, v7x has 64 MiB.
    try:
        return int(pltpu.get_tpu_info().vmem_capacity_bytes)
    except Exception:
        return 64 * 1024 * 1024   # conservative default (v7x per-TC)


def focal_loss(inputs, targets, alpha=0.75, gamma=2, reduction="mean", eps=1e-6):
    """inputs: logits (any shape), targets: binary/soft targets (same shape)."""
    total = int(np.prod(inputs.shape))

    x = jnp.reshape(inputs, (-1,))
    if not jnp.issubdtype(x.dtype, jnp.floating):
        x = x.astype(jnp.float32)
    t = jnp.reshape(targets, (-1,))
    if not jnp.issubdtype(t.dtype, jnp.floating):
        t = t.astype(jnp.float32)

    # ---- lane-dense 2-D layout (rows, bc): prefer a bc (multiple of 128) that
    # divides total so NO wrapper-side pad copy is needed.
    bc = None
    for cand in (512, 384, 256, 128):
        if total % cand == 0:
            bc = cand
            break
    if bc is None:
        # Rare fallback (total not a multiple of 128): pad only to the next
        # multiple of bc; padded elements are masked out in-kernel.
        bc = 512 if total >= 512 else _round_up(total, 128)
        pad = _round_up(total, bc) - total
        x = jnp.pad(x, (0, pad))
        t = jnp.pad(t, (0, pad))
    rows = _cdiv(total, bc)

    # ---- generation-aware row-block size (big blocks amortize per-step overhead).
    vmem = _vmem_capacity_bytes()
    big_vmem = vmem >= 96 * 1024 * 1024
    max_br = 2048 if big_vmem else 1024          # 4 MiB vs 2 MiB f32 block @ bc=512
    vmem_limit = (80 if big_vmem else 40) * 1024 * 1024

    if rows <= 8:
        br = rows                                 # single block == full row extent
    else:
        # >= 2 grid steps where possible (both v7x TensorCores busy); rows per
        # block stay a multiple of 8 sublanes.
        br = min(max_br, _round_up(_cdiv(rows, 2), 8))
    g = _cdiv(rows, br)

    needs_mask = (g * br != rows) or (total % bc != 0)

    x = x.reshape(rows, bc)
    t = t.reshape(rows, bc)

    kernel = functools.partial(
        _focal_loss_kernel,
        alpha=float(alpha),
        gamma=gamma,                 # static trace-time value
        eps=float(eps),
        full_rows=total // bc,
        rem_cols=total % bc,
        needs_mask=needs_mask,
    )

    cost = pl.CostEstimate(
        flops=16 * total,
        transcendentals=2 * total,               # exp + log1p per element
        bytes_accessed=int(x.size) * x.dtype.itemsize
        + int(t.size) * t.dtype.itemsize
        + g * bc * 4,
    )

    partials = pl.pallas_call(
        kernel,
        out_shape=jax.ShapeDtypeStruct((g, 1, bc), jnp.float32),
        grid=(g,),
        in_specs=[
            pl.BlockSpec((br, bc), lambda i: (i, 0)),
            pl.BlockSpec((br, bc), lambda i: (i, 0)),
        ],
        out_specs=pl.BlockSpec((1, 1, bc), lambda i: (i, 0, 0)),
        compiler_params=pltpu.CompilerParams(
            dimension_semantics=("parallel",),
            vmem_limit_bytes=vmem_limit,
        ),
        cost_estimate=cost,
    )(x, t)

    s = jnp.sum(partials)
    if reduction == "mean":
        return s / jnp.float32(total)
    elif reduction == "sum":
        return s
    else:
        # TODO(synk): reduction='none' (full elementwise output) would need a
        # separate non-reducing elementwise kernel; only 'mean'/'sum' supported.
        raise NotImplementedError("reduction='none' is not supported by this Pallas kernel")


def _reference(inputs, targets, alpha=0.75, gamma=2, eps=1e-6):
    x = inputs.astype(jnp.float32)
    t = targets.astype(jnp.float32)
    bce = jnp.maximum(x, 0.0) - x * t + jnp.log1p(jnp.exp(-jnp.abs(x)))
    pt = jnp.clip(jax.nn.sigmoid(x), eps, 1.0 - eps)
    w = alpha * (1.0 - pt) ** gamma * t + (1.0 - alpha) * pt ** gamma * (1.0 - t)
    return jnp.mean(w * bce)


if __name__ == "__main__":
    key = jax.random.PRNGKey(0)

    def check(shape, k):
        k1, k2 = jax.random.split(k)
        logits = jax.random.normal(k1, shape, dtype=jnp.float32)
        targets = jax.random.bernoulli(k2, 0.5, shape).astype(jnp.float32)
        out = jax.block_until_ready(focal_loss(logits, targets))
        ref = jax.block_until_ready(_reference(logits, targets))
        assert jnp.allclose(out, ref, rtol=1e-5, atol=1e-6), (shape, out, ref)

    k = key
    for shape in [
        (2, 4, 16, 16),   # main shape: clean divisor, no masking
        (13, 128),        # partial last row-block + 2-step grid + mask path
        (2, 3, 15, 11),   # pad-fallback path (total % 128 != 0) + column mask
    ]:
        k, sub = jax.random.split(k)
        check(shape, sub)

    print("KERNEL_OK")
</pallas_src>

<mosaic_0001>
module attributes {stable_mosaic.version = 11 : i64} {
  func.func @_focal_loss_kernel(%arg0: i32, %arg1: memref<4x512xf32, #tpu.memory_space<vmem>>, %arg2: memref<4x512xf32, #tpu.memory_space<vmem>>, %arg3: memref<1x1x512xf32, #tpu.memory_space<vmem>>) attributes {dimension_semantics = [#tpu.dimension_semantics<parallel>], iteration_bounds = array<i64: 1>, scalar_prefetch = 0 : i64, scratch_operands = 0 : i64, tpu.core_type = #tpu.core_type<tc>, window_params = [{transform_indices = @transform_0, window_bounds = array<i64: 4, 512>}, {transform_indices = @transform_1, window_bounds = array<i64: 4, 512>}, {transform_indices = @transform_2, window_bounds = array<i64: 1, 1, 512>}]} {
    %c0 = arith.constant 0 : index
    %c0_0 = arith.constant 0 : index
    %0 = vector.load %arg1[%c0, %c0_0] : memref<4x512xf32, #tpu.memory_space<vmem>>, vector<4x512xf32>
    %c0_1 = arith.constant 0 : index
    %c0_2 = arith.constant 0 : index
    %1 = vector.load %arg2[%c0_1, %c0_2] : memref<4x512xf32, #tpu.memory_space<vmem>>, vector<4x512xf32>
    %2 = math.absf %0 : vector<4x512xf32>
    %cst = arith.constant 0.000000e+00 : f32
    %3 = vector.broadcast %cst : f32 to vector<4x512xf32>
    %4 = arith.subf %3, %2 : vector<4x512xf32>
    %5 = math.exp %4 : vector<4x512xf32>
    %cst_3 = arith.constant 0.000000e+00 : f32
    %6 = vector.broadcast %cst_3 : f32 to vector<4x512xf32>
    %7 = arith.maximumf %0, %6 : vector<4x512xf32>
    %8 = arith.mulf %0, %1 : vector<4x512xf32>
    %9 = arith.subf %7, %8 : vector<4x512xf32>
    %10 = math.log1p %5 : vector<4x512xf32>
    %11 = arith.addf %9, %10 : vector<4x512xf32>
    %cst_4 = arith.constant 0.000000e+00 : f32
    %12 = vector.broadcast %cst_4 : f32 to vector<4x512xf32>
    %13 = arith.cmpf oge, %0, %12 : vector<4x512xf32>
    %cst_5 = arith.constant 1.000000e+00 : f32
    %14 = vector.broadcast %cst_5 : f32 to vector<4x512xf32>
    %15 = arith.select %13, %14, %5 : vector<4x512xi1>, vector<4x512xf32>
    %cst_6 = arith.constant 1.000000e+00 : f32
    %16 = vector.broadcast %cst_6 : f32 to vector<4x512xf32>
    %17 = arith.addf %16, %5 : vector<4x512xf32>
    %18 = arith.divf %15, %17 : vector<4x512xf32>
    %cst_7 = arith.constant 9.99999997E-7 : f32
    %cst_8 = arith.constant 0.999998986 : f32
    %19 = vector.broadcast %cst_7 : f32 to vector<4x512xf32>
    %20 = arith.maximumf %19, %18 : vector<4x512xf32>
    %21 = vector.broadcast %cst_8 : f32 to vector<4x512xf32>
    %22 = arith.minimumf %21, %20 : vector<4x512xf32>
    %cst_9 = arith.constant 1.000000e+00 : f32
    %23 = vector.broadcast %cst_9 : f32 to vector<4x512xf32>
    %24 = arith.subf %23, %22 : vector<4x512xf32>
    %25 = arith.mulf %24, %24 : vector<4x512xf32>
    %26 = arith.mulf %22, %22 : vector<4x512xf32>
    %cst_10 = arith.constant 7.500000e-01 : f32
    %27 = vector.broadcast %cst_10 : f32 to vector<4x512xf32>
    %28 = arith.mulf %27, %25 : vector<4x512xf32>
    %29 = arith.mulf %28, %1 : vector<4x512xf32>
    %cst_11 = arith.constant 2.500000e-01 : f32
    %30 = vector.broadcast %cst_11 : f32 to vector<4x512xf32>
    %31 = arith.mulf %30, %26 : vector<4x512xf32>
    %cst_12 = arith.constant 1.000000e+00 : f32
    %32 = vector.broadcast %cst_12 : f32 to vector<4x512xf32>
    %33 = arith.subf %32, %1 : vector<4x512xf32>
    %34 = arith.mulf %31, %33 : vector<4x512xf32>
    %35 = arith.addf %29, %34 : vector<4x512xf32>
    %36 = arith.mulf %35, %11 : vector<4x512xf32>
    %cst_13 = arith.constant dense<0.000000e+00> : vector<512xf32>
    %37 = vector.multi_reduction <add>, %36, %cst_13 [0] : vector<4x512xf32> to vector<512xf32>
    %38 = vector.shape_cast %37 : vector<512xf32> to vector<1x512xf32>
    %c0_14 = arith.constant 0 : index
    %c0_15 = arith.constant 0 : index
    %c0_16 = arith.constant 0 : index
    %39 = vector.load %arg3[%c0_14, %c0_15, %c0_16] : memref<1x1x512xf32, #tpu.memory_space<vmem>>, vector<1x1x512xf32>
    %40 = vector.shape_cast %39 : vector<1x1x512xf32> to vector<1x512xf32>
    %41 = vector.shape_cast %38 : vector<1x512xf32> to vector<1x1x512xf32>
    tpu.vector_store %arg3[%c0_14, %c0_15, %c0_16], %41 {strides = array<i32>} : memref<1x1x512xf32, #tpu.memory_space<vmem>>, vector<1x1x512xf32>,
    return
  }
  func.func @transform_0(%arg0: i32) -> (i32, i32) {
    %c0_i32 = arith.constant 0 : i32
    %c0_i32_0 = arith.constant 0 : i32
    return %arg0, %c0_i32 : i32, i32
  }
  func.func @transform_1(%arg0: i32) -> (i32, i32) {
    %c0_i32 = arith.constant 0 : i32
    %c0_i32_0 = arith.constant 0 : i32
    return %arg0, %c0_i32 : i32, i32
  }
  func.func @transform_2(%arg0: i32) -> (i32, i32, i32) {
    %c0_i32 = arith.constant 0 : i32
    %c0_i32_0 = arith.constant 0 : i32
    %c0_i32_1 = arith.constant 0 : i32
    return %arg0, %c0_i32, %c0_i32_0 : i32, i32, i32
  }
}

</mosaic_0001>

<llo_original>
// kernel: tpu_custom_call.1
$region0: #{tpu_custom_call.1}
  #allocation0 [shape = 'u32[]', space=smem, size = 0x4, offset = 0x4, fixed_abs, tag = 'smem constant byte address 0x4 - core index']
  #allocation1 [shape = 'u32[144,128]{1,0:T(1,128)}', space=vmem, size = 0x12000, scoped, tag = 'internal scratch']
  %s0 = inlined_call_operand.hbm [shape: f32[4,512], index: 0, kind: input, shape index: {}]
  %s1 = inlined_call_operand.hbm [shape: f32[4,512], index: 1, kind: input, shape index: {}]
  %s2 = inlined_call_operand.hbm [shape: f32[1,1,512], index: 2, kind: output, shape index: {}]
  %s3 = sld [smem:[#allocation0]]
  $region26: #{tpu_custom_call.1} parent=0
    _
  %s5 = ssub.s32 1, %s3
  %s6 = scalar_select 0, %s5, %s3
  $region1: #{tpu_custom_call.1} parent=0
    #allocation2 [shape = 'u8[8192]{0}', space=vmem, size = 0x2000, scoped, tag = 'input window, operand 0, single buffered']
    #allocation3 [shape = 's32[1]{0}', space=sflag, size = 0x4, scoped, tag = 'scoped memory for tpu_custom_call.1']
    #allocation4 [shape = 's32[1]{0}', space=sflag, size = 0x4, scoped, tag = 'scoped memory for tpu_custom_call.1']
    #allocation5 [shape = 'u8[8192]{0}', space=vmem, size = 0x2000, scoped, tag = 'input window, operand 1, single buffered']
    #allocation6 [shape = 's32[1]{0}', space=sflag, size = 0x4, scoped, tag = 'scoped memory for tpu_custom_call.1']
    #allocation7 [shape = 'u8[2048]{0}', space=vmem, size = 0x800, scoped, tag = 'output window, operand 0, single buffered']
    %7 = vsyncpa [#allocation3], 0
    %8 = vsyncpa [#allocation6], 0
    %9 = vsyncpa [#allocation4], 0
    // Predicated region
    $region2: #{tpu_custom_call.1} parent=1 // pred_check
      _
    $region3: #{tpu_custom_call.1} parent=1 // pred_check_branch
      %11 = sbr.rel (0) target = $region5
    $region4: #{tpu_custom_call.1} parent=1 // pred_region
      %s13 = ssub.s32 256, 256
      %14 = vsyncadd [#allocation3], %s13
      %s16 = sshll.u32 [#allocation2], 4
      %s17 = int_to_ptr.vmem [resolvable:$true] %s16
      %19 = dma.hbm_to_vmem [thread:$0]  %s0, 256, %s17, [#allocation3]
    $region5: #{tpu_custom_call.1} parent=1 // pred_fallthru
      _
    // Predicated region
    $region6: #{tpu_custom_call.1} parent=1 // pred_check
      _
    $region7: #{tpu_custom_call.1} parent=1 // pred_check_branch
      %21 = sbr.rel (0) target = $region9
    $region8: #{tpu_custom_call.1} parent=1 // pred_region
      %s23 = ssub.s32 256, 256
      %24 = vsyncadd [#allocation6], %s23
      %s26 = sshll.u32 [#allocation5], 4
      %s27 = int_to_ptr.vmem [resolvable:$true] %s26
      %29 = dma.hbm_to_vmem [thread:$0]  %s1, 256, %s27, [#allocation6]
    $region9: #{tpu_custom_call.1} parent=1 // pred_fallthru
      _
    // Predicated region
    $region10: #{tpu_custom_call.1} parent=1 // pred_check
      _
    $region11: #{tpu_custom_call.1} parent=1 // pred_check_branch
      %31 = sbr.rel (0) target = $region13
    $region12: #{tpu_custom_call.1} parent=1 // pred_region
      %32 = dma.done [#allocation3], 256
    $region13: #{tpu_custom_call.1} parent=1 // pred_fallthru
      _
    // Predicated region
    $region14: #{tpu_custom_call.1} parent=1 // pred_check
      _
    $region15: #{tpu_custom_call.1} parent=1 // pred_check_branch
      %34 = sbr.rel (0) target = $region17
    $region16: #{tpu_custom_call.1} parent=1 // pred_region
      %35 = dma.done [#allocation6], 256
    $region17: #{tpu_custom_call.1} parent=1 // pred_fallthru
      _
    %v36 = vld [vmem:[#allocation2] sm:$0xff]
    %v37 = vld [vmem:[#allocation2 + $0x8] sm:$0xff]
    %v38 = vld [vmem:[#allocation5] sm:$0xff]
    %v39 = vld [vmem:[#allocation5 + $0x8] sm:$0xff]
    %v40 = vand.u32 2147483647, %v36
    %v41 = vand.u32 2147483647, %v37
    %v42 = vsub.f32 0.0, %v40
    %v43 = vsub.f32 0.0, %v41
    %v44 = vmul.f32 %v42, 1.442695
    %v45 = vpow.pop %v44
    %v46 = vmul.f32 %v43, 1.442695
    %v47 = vpow.pop %v46
    %v48 = vmax.f32 %v36, 0.0
    %v49 = vmax.f32 %v37, 0.0
    %v50 = vmul.f32 %v36, %v38
    %v51 = vmul.f32 %v37, %v39
    %v52 = vsub.f32 %v48, %v50
    %v53 = vsub.f32 %v49, %v51
    %v54 = vadd.f32 %v45, 1.0
    %v55 = vlog2.pop %v54
    %v56 = vmul.f32 %v55, 0.6931472
    %v57 = vmul.f32 -0.5, %v45
    %v58 = vadd.f32 %v57, 1.0
    %v59 = vmul.f32 %v58, %v45
    %v60 = vand.u32 2147483647, %v45
    %vm61 = vcmp.lt.f32.partialorder %v60, 0.0004427343
    %v62 = vsel %vm61, %v59, %v56
    %v63 = vadd.f32 %v47, 1.0
    %v64 = vlog2.pop %v63
    %v65 = vmul.f32 %v64, 0.6931472
    %v66 = vmul.f32 -0.5, %v47
    %v67 = vadd.f32 %v66, 1.0
    %v68 = vmul.f32 %v67, %v47
    %v69 = vand.u32 2147483647, %v47
    %vm70 = vcmp.lt.f32.partialorder %v69, 0.0004427343
    %v71 = vsel %vm70, %v68, %v65
    %v72 = vadd.f32 %v52, %v62
    %v73 = vadd.f32 %v53, %v71
    %vm74 = vcmp.ge.f32.partialorder %v36, 0.0
    %vm75 = vcmp.ge.f32.partialorder %v37, 0.0
    %v76 = vsel %vm74, 1.0, %v45
    %v77 = vsel %vm75, 1.0, %v47
    %v78 = vadd.f32 %v45, 1.0
    %v79 = vadd.f32 %v47, 1.0
    %v80 = vrcp.pop %v78
    %v81 = vmul.f32 %v76, %v80
    %v82 = vrcp.pop %v79
    %v83 = vmul.f32 %v77, %v82
    %v84 = vmax.f32 %v81, 1e-06
    %v85 = vmax.f32 %v83, 1e-06
    %v86 = vmin.f32 %v84, 0.999999
    %v87 = vmin.f32 %v85, 0.999999
    %v88 = vsub.f32 1.0, %v86
    %v89 = vsub.f32 1.0, %v87
    %v90 = vmul.f32 %v88, %v88
    %v91 = vmul.f32 %v89, %v89
    %v92 = vmul.f32 %v86, %v86
    %v93 = vmul.f32 %v87, %v87
    %v94 = vmul.f32 %v90, 0.75
    %v95 = vmul.f32 %v91, 0.75
    %v96 = vmul.f32 %v94, %v38
    %v97 = vmul.f32 %v95, %v39
    %v98 = vmul.f32 %v92, 0.25
    %v99 = vmul.f32 %v93, 0.25
    %v100 = vsub.f32 1.0, %v38
    %v101 = vsub.f32 1.0, %v39
    %v102 = vmul.f32 %v98, %v100
    %v103 = vmul.f32 %v99, %v101
    %v104 = vadd.f32 %v96, %v102
    %v105 = vadd.f32 %v97, %v103
    %v106 = vmul.f32 %v104, %v72
    %v107 = vmul.f32 %v105, %v73
    %v110 = vcombine.high %v106, %v106
    %v111 = vcombine.high %v107, %v107
    %vm114 = vcmask 1043456
    %v115 = vsel %vm114, %v106, 0.0
    %v116 = vrot.slane %v115, 4
    %v117 = vadd.f32 %v115, %v116
    %v118 = vrot.slane %v117, 2
    %v119 = vadd.f32 %v117, %v118
    %v120 = vrot.slane %v119, 1
    %v121 = vadd.f32 %v119, %v120
    %v122 = vsel %vm114, %v110, 0.0
    %v123 = vrot.slane %v122, 4
    %v124 = vadd.f32 %v122, %v123
    %v125 = vrot.slane %v124, 2
    %v126 = vadd.f32 %v124, %v125
    %v127 = vrot.slane %v126, 1
    %v128 = vadd.f32 %v126, %v127
    %v129 = vsel %vm114, %v107, 0.0
    %v130 = vrot.slane %v129, 4
    %v131 = vadd.f32 %v129, %v130
    %v132 = vrot.slane %v131, 2
    %v133 = vadd.f32 %v131, %v132
    %v134 = vrot.slane %v133, 1
    %v135 = vadd.f32 %v133, %v134
    %v136 = vsel %vm114, %v111, 0.0
    %v137 = vrot.slane %v136, 4
    %v138 = vadd.f32 %v136, %v137
    %v139 = vrot.slane %v138, 2
    %v140 = vadd.f32 %v138, %v139
    %v141 = vrot.slane %v140, 1
    %v142 = vadd.f32 %v140, %v141
    %v147 = vcombine.low %v121, %v128
    %v148 = vcombine.low %v135, %v142
    %v150 = vunpack.c.l.s4 1966171168
    %v151 = vunpack.c.0.s8 %v150
    %v152 = vlaneseq
    %v153 = vshrl.u32 %v152, 7
    %v154 = vsub.s32 %v151, %v153
    %v155 = vrot.slane %v147, %v154
    %v157 = vunpack.c.l.s4 1966171168
    %v158 = vunpack.c.0.s8 %v157
    %v159 = vlaneseq
    %v160 = vshrl.u32 %v159, 7
    %v161 = vsub.s32 %v158, %v160
    %v162 = vrot.slane %v148, %v161
    %v163 = vcombine.low %v155, %v162
    %v165 = vunpack.c.l.s4 1966171168
    %v166 = vunpack.c.0.s8 %v165
    %v167 = vlaneseq
    %v168 = vshrl.u32 %v167, 7
    %v169 = vsub.s32 %v166, %v168
    %v170 = vrot.slane %v163, %v169
    %v172 = vlaneseq
    %vm173 = vcmp.ge.s32.totalorder %v172, 0
    %vm174 = vcmp.lt.s32.totalorder %v172, 512
    %vm175 = vmand %vm173, %vm174
    %176 = vst.msk [vmem:[#allocation7] sm:$0xf] %vm175, %v170
    // Predicated region
    $region18: #{tpu_custom_call.1} parent=1 // pred_check
      _
    $region19: #{tpu_custom_call.1} parent=1 // pred_check_branch
      %178 = sbr.rel (0) target = $region21
    $region20: #{tpu_custom_call.1} parent=1 // pred_region
      %s180 = ssub.s32 64, 64
      %181 = vsyncadd [#allocation4], %s180
      %s183 = sshll.u32 [#allocation7], 4
      %s184 = int_to_ptr.vmem [resolvable:$true] %s183
      %186 = dma.vmem_to_hbm [thread:$0]  %s184, 64, %s2, [#allocation4]
    $region21: #{tpu_custom_call.1} parent=1 // pred_fallthru
      _
    // Predicated region
    $region22: #{tpu_custom_call.1} parent=1 // pred_check
      _
    $region23: #{tpu_custom_call.1} parent=1 // pred_check_branch
      %188 = sbr.rel (0) target = $region25
    $region24: #{tpu_custom_call.1} parent=1 // pred_region
      %189 = dma.done [#allocation4], 64
    $region25: #{tpu_custom_call.1} parent=1 // pred_fallthru
      _
    %190 = vsyncpa [#allocation3], 1
    %191 = vsyncpa [#allocation6], 1
    %192 = vsyncpa [#allocation4], 1

</llo_original>
